<compile_context>
chip_gen: v5e
topology: v5e:2x2
jax: 0.10.0
libtpu: 0.0.40
codegen_flags: <defaults>
</compile_context>

<pallas_src>
import functools

import jax
import jax.numpy as jnp
from jax.experimental import pallas as pl
from jax.experimental.pallas import tpu as pltpu

_LANE = 128
_PAD_LOGIT = -30.0   # sigmoid(-30) ~ 9e-14, log1p(exp(-30)) ~ 9e-14 -> negligible


def _sublane_align(dtype):
    """Minimum legal sublane tile for a dtype: 8 (4B), 16 (2B), 32 (1B)."""
    itemsize = jnp.dtype(dtype).itemsize
    return {4: 8, 2: 16, 1: 32}.get(itemsize, 8)


def _bce_dice_kernel(pred_ref, targ_ref, out_ref, *,
                     tile_rows, tiles_per_core, rows_total):
    c = pl.program_id(0)           # core split (parallel)
    i = pl.program_id(1)           # streaming reduction axis (arbitrary)

    @pl.when(i == 0)
    def _():
        out_ref[...] = jnp.zeros_like(out_ref)

    x = pred_ref[...].astype(jnp.float32)
    t = targ_ref[...].astype(jnp.float32)

    # One transcendental pair per element: e = exp(-|x|), log(1 + e).
    e = jnp.exp(-jnp.abs(x))
    one_plus_e = 1.0 + e                                   # reused by both terms
    inv = pl.reciprocal(one_plus_e, approx=False)          # approx=True -> EUP vrcp
    bce = jnp.maximum(x, 0.0) - x * t + jnp.log(one_plus_e)  # stable BCE-with-logits
    p = jnp.where(x >= 0.0, inv, e * inv)                  # stable sigmoid(x)
    pt = p * t

    rows, lanes = x.shape
    k = rows // 8

    def accumulate(b_, pt_, p_, t_):
        def fold(v):   # (tile_rows, 128) -> (8, 128): pure VPU vreg adds, no XLU
            return v.reshape(k, 8, lanes).sum(axis=0)
        out_ref[0] += fold(b_)     # sum of per-element BCE terms
        out_ref[1] += fold(pt_)    # intersection
        out_ref[2] += fold(p_)     # sum sigmoid(pred)
        out_ref[3] += fold(t_)     # sum target

    # Row-level global offset (int32 is safe for < 2^31 rows = ~2.7e11 elems).
    tile_row0 = (c * tiles_per_core + i) * tile_rows
    in_bounds = tile_row0 + tile_rows <= rows_total

    @pl.when(in_bounds)
    def _():                       # steady state: no masking at all
        accumulate(bce, pt, p, t)

    @pl.when(jnp.logical_not(in_bounds))
    def _():                       # boundary (or fully over-range) tile only
        r = jax.lax.broadcasted_iota(jnp.int32, x.shape, 0)
        m = (tile_row0 + r) < rows_total
        z = jnp.zeros_like(x)
        # where (select), not multiply: garbage rows may hold NaN/Inf.
        accumulate(jnp.where(m, bce, z), jnp.where(m, pt, z),
                   jnp.where(m, p, z), jnp.where(m, t, z))


def bce_dice_loss(pred, target, *, bce_weight=0.5, dice_weight=0.5,
                  smooth=1e-6, tile_rows=8192, max_cores=1):
    """Pallas implementation of BCEDiceLoss.forward (returns a scalar f32).

    Set max_cores=2 on v7x (two TensorCores); leave at 1 on v5e/v6e.
    """
    flat_p = pred.reshape(-1)          # native dtype in HBM; kernel upcasts
    flat_t = target.reshape(-1)
    n = flat_p.shape[0]

    align = max(_sublane_align(flat_p.dtype), _sublane_align(flat_t.dtype))
    rows = pl.cdiv(n, _LANE)
    rows_aligned = pl.cdiv(rows, align) * align
    pad = rows_aligned * _LANE - n
    if pad:
        # Only the small (< align*128 element) tail is ever padded; -30 logits
        # make padded elements contribute ~1e-13 to every sum, so no in-kernel
        # mask is needed for the tail.  Aligned inputs skip this copy entirely.
        flat_p = jnp.pad(flat_p, (0, pad), constant_values=_PAD_LOGIT)
        flat_t = jnp.pad(flat_t, (0, pad))
    p2 = flat_p.reshape(rows_aligned, _LANE)
    t2 = flat_t.reshape(rows_aligned, _LANE)

    # Tile sizing: multiple of 32 rows (covers 1/2/4-byte dtypes), clamped to
    # the (align-multiple) total row count for small inputs.
    tile_rows = max(32, pl.cdiv(tile_rows, 32) * 32)
    tile_rows = min(tile_rows, rows_aligned)
    n_tiles = pl.cdiv(rows_aligned, tile_rows)
    num_cores = max_cores if n_tiles >= max_cores else 1
    tiles_per_core = pl.cdiv(n_tiles, num_cores)
    last_tile = n_tiles - 1

    kernel = functools.partial(
        _bce_dice_kernel,
        tile_rows=tile_rows,
        tiles_per_core=tiles_per_core,
        rows_total=rows_aligned,
    )

    # Clamped index_map: an over-range grid step (only possible when the core
    # split doesn't divide n_tiles) re-reads the last valid block and is fully
    # masked inside the kernel.
    in_spec = pl.BlockSpec(
        (tile_rows, _LANE),
        lambda c, i: (jnp.minimum(c * tiles_per_core + i, last_tile), 0))
    # Resident accumulator block: same block index for every i along the
    # reduction axis; one block per core along the parallel axis.
    out_spec = pl.BlockSpec((None, 4, 8, _LANE), lambda c, i: (c, 0, 0, 0))

    partials = pl.pallas_call(
        kernel,
        out_shape=jax.ShapeDtypeStruct((num_cores, 4, 8, _LANE), jnp.float32),
        grid_spec=pltpu.PrefetchScalarGridSpec(
            num_scalar_prefetch=0,
            grid=(num_cores, tiles_per_core),
            in_specs=[in_spec, in_spec],
            out_specs=out_spec,
        ),
        compiler_params=pltpu.CompilerParams(
            dimension_semantics=("parallel", "arbitrary"),
            # 2 streams x 2 buffers x 4 MiB = 16 MiB at tile_rows=8192 (f32);
            # 48 MiB gives headroom while staying under v7x's 64 MiB physical.
            vmem_limit_bytes=48 * 1024 * 1024,
        ),
    )(p2, t2)

    # Tiny epilogue outside the kernel: reduce (num_cores,4,8,128) partials and
    # combine the two loss terms.  BCE mean divides by the true element count.
    sums = jnp.sum(partials, axis=(0, 2, 3))
    bce_mean = sums[0] / n
    dice = (2.0 * sums[1] + smooth) / (sums[2] + sums[3] + smooth)
    return bce_weight * bce_mean + dice_weight * (1.0 - dice)


def _reference(pred, target, bce_weight=0.5, dice_weight=0.5, smooth=1e-6):
    """Pure-JAX reference matching the PyTorch module semantics."""
    x = pred.astype(jnp.float32).reshape(-1)
    t = target.astype(jnp.float32).reshape(-1)
    bce = jnp.mean(jnp.maximum(x, 0.0) - x * t + jnp.log1p(jnp.exp(-jnp.abs(x))))
    p = jax.nn.sigmoid(x)
    inter = jnp.sum(p * t)
    dice = (2.0 * inter + smooth) / (jnp.sum(p) + jnp.sum(t) + smooth)
    return bce_weight * bce + dice_weight * (1.0 - dice)


if __name__ == "__main__":
    key = jax.random.PRNGKey(0)
    k1, k2, k3, k4 = jax.random.split(key, 4)

    # 1) Primary: NCHW segmentation logits / binary targets (2, 4, 16, 16).
    #    n % (8*128) == 0 -> zero-copy path, single tile.
    pred = jax.random.normal(k1, (2, 4, 16, 16), dtype=jnp.float32)
    target = (jax.random.uniform(k2, (2, 4, 16, 16)) > 0.5).astype(jnp.float32)
    loss = bce_dice_loss(pred, target)
    jax.block_until_ready(loss)
    ref = _reference(pred, target)
    assert jnp.allclose(loss, ref, atol=1e-5, rtol=1e-4), (loss, ref)

    # 2) Ragged element count: exercises the small lane-tail pad (-30 logits).
    pred_r = jax.random.normal(k3, (2, 3, 15, 17), dtype=jnp.float32)
    target_r = (jax.random.uniform(k4, (2, 3, 15, 17)) > 0.5).astype(jnp.float32)
    loss_r = bce_dice_loss(pred_r, target_r)
    jax.block_until_ready(loss_r)
    ref_r = _reference(pred_r, target_r)
    assert jnp.allclose(loss_r, ref_r, atol=1e-5, rtol=1e-4), (loss_r, ref_r)

    # 3) Multi-tile + 2-way core split (v7x-style), tiles divide evenly.
    pred_m = jax.random.normal(k1, (2, 4, 64, 64), dtype=jnp.float32)
    target_m = (jax.random.uniform(k2, (2, 4, 64, 64)) > 0.5).astype(jnp.float32)
    loss_m = bce_dice_loss(pred_m, target_m, tile_rows=64, max_cores=2)
    jax.block_until_ready(loss_m)
    ref_m = _reference(pred_m, target_m)
    assert jnp.allclose(loss_m, ref_m, atol=1e-5, rtol=1e-4), (loss_m, ref_m)

    # 4) Ragged tile count: boundary-tile mask + clamped over-range grid step.
    pred_b = jax.random.normal(k3, (2, 4, 72, 64), dtype=jnp.float32)
    target_b = (jax.random.uniform(k4, (2, 4, 72, 64)) > 0.5).astype(jnp.float32)
    loss_b = bce_dice_loss(pred_b, target_b, tile_rows=64, max_cores=2)
    jax.block_until_ready(loss_b)
    ref_b = _reference(pred_b, target_b)
    assert jnp.allclose(loss_b, ref_b, atol=1e-5, rtol=1e-4), (loss_b, ref_b)

    print("KERNEL_OK")
</pallas_src>

<mosaic_0001>
module attributes {stable_mosaic.version = 11 : i64} {
  func.func @_bce_dice_kernel(%arg0: i32, %arg1: i32, %arg2: memref<16x128xf32, #tpu.memory_space<vmem>>, %arg3: memref<16x128xf32, #tpu.memory_space<vmem>>, %arg4: memref<1x4x8x128xf32, #tpu.memory_space<vmem>>) attributes {dimension_semantics = [#tpu.dimension_semantics<parallel>, #tpu.dimension_semantics<arbitrary>], iteration_bounds = array<i64: 1, 1>, scalar_prefetch = 0 : i64, scratch_operands = 0 : i64, tpu.core_type = #tpu.core_type<tc>, window_params = [{transform_indices = @transform_0, window_bounds = array<i64: 16, 128>}, {transform_indices = @transform_1, window_bounds = array<i64: 16, 128>}, {transform_indices = @transform_2, window_bounds = array<i64: 1, 4, 8, 128>}]} {
    %c0_i32 = arith.constant 0 : i32
    %0 = arith.cmpi eq, %arg1, %c0_i32 : i32
    %1 = arith.extui %0 : i1 to i32
    %c0_i32_0 = arith.constant 0 : i32
    %2 = arith.cmpi ne, %1, %c0_i32_0 : i32
    scf.if %2 {
      %cst_11 = arith.constant 0.000000e+00 : f32
      %33 = vector.broadcast %cst_11 : f32 to vector<4x8x128xf32>
      %c0_12 = arith.constant 0 : index
      %c0_13 = arith.constant 0 : index
      %c0_14 = arith.constant 0 : index
      %c0_15 = arith.constant 0 : index
      %34 = vector.load %arg4[%c0_12, %c0_13, %c0_14, %c0_15] : memref<1x4x8x128xf32, #tpu.memory_space<vmem>>, vector<1x4x8x128xf32>
      %35 = vector.shape_cast %34 : vector<1x4x8x128xf32> to vector<4x8x128xf32>
      %36 = vector.shape_cast %33 : vector<4x8x128xf32> to vector<1x4x8x128xf32>
      tpu.vector_store %arg4[%c0_12, %c0_13, %c0_14, %c0_15], %36 {strides = array<i32>} : memref<1x4x8x128xf32, #tpu.memory_space<vmem>>, vector<1x4x8x128xf32>,
    } else {
    }
    %c0 = arith.constant 0 : index
    %c0_1 = arith.constant 0 : index
    %3 = vector.load %arg2[%c0, %c0_1] : memref<16x128xf32, #tpu.memory_space<vmem>>, vector<16x128xf32>
    %c0_2 = arith.constant 0 : index
    %c0_3 = arith.constant 0 : index
    %4 = vector.load %arg3[%c0_2, %c0_3] : memref<16x128xf32, #tpu.memory_space<vmem>>, vector<16x128xf32>
    %5 = math.absf %3 : vector<16x128xf32>
    %cst = arith.constant 0.000000e+00 : f32
    %6 = vector.broadcast %cst : f32 to vector<16x128xf32>
    %7 = arith.subf %6, %5 : vector<16x128xf32>
    %8 = math.exp %7 : vector<16x128xf32>
    %cst_4 = arith.constant 1.000000e+00 : f32
    %9 = vector.broadcast %cst_4 : f32 to vector<16x128xf32>
    %10 = arith.addf %9, %8 : vector<16x128xf32>
    %11 = tpu.reciprocal %10 : vector<16x128xf32> -> vector<16x128xf32>
    %cst_5 = arith.constant 0.000000e+00 : f32
    %12 = vector.broadcast %cst_5 : f32 to vector<16x128xf32>
    %13 = arith.maximumf %3, %12 : vector<16x128xf32>
    %14 = arith.mulf %3, %4 : vector<16x128xf32>
    %15 = arith.subf %13, %14 : vector<16x128xf32>
    %16 = math.log %10 : vector<16x128xf32>
    %17 = arith.addf %15, %16 : vector<16x128xf32>
    %cst_6 = arith.constant 0.000000e+00 : f32
    %18 = vector.broadcast %cst_6 : f32 to vector<16x128xf32>
    %19 = arith.cmpf oge, %3, %18 : vector<16x128xf32>
    %20 = arith.mulf %8, %11 : vector<16x128xf32>
    %21 = arith.select %19, %11, %20 : vector<16x128xi1>, vector<16x128xf32>
    %22 = arith.mulf %21, %4 : vector<16x128xf32>
    %c1_i32 = arith.constant 1 : i32
    %23 = arith.muli %arg0, %c1_i32 : i32
    %24 = arith.addi %23, %arg1 : i32
    %c16_i32 = arith.constant 16 : i32
    %25 = arith.muli %24, %c16_i32 : i32
    %c16_i32_7 = arith.constant 16 : i32
    %26 = arith.addi %25, %c16_i32_7 : i32
    %c16_i32_8 = arith.constant 16 : i32
    %27 = arith.cmpi sle, %26, %c16_i32_8 : i32
    %28 = arith.extui %27 : i1 to i32
    %c0_i32_9 = arith.constant 0 : i32
    %29 = arith.cmpi ne, %28, %c0_i32_9 : i32
    scf.if %29 {
      %c0_11 = arith.constant 0 : index
      %c0_12 = arith.constant 0 : index
      %c0_13 = arith.constant 0 : index
      %c0_14 = arith.constant 0 : index
      %33 = vector.load %arg4[%c0_11, %c0_12, %c0_13, %c0_14] : memref<1x4x8x128xf32, #tpu.memory_space<vmem>>, vector<1x1x8x128xf32>
      %34 = vector.shape_cast %33 : vector<1x1x8x128xf32> to vector<8x128xf32>
      %35 = vector.shape_cast %17 : vector<16x128xf32> to vector<2x8x128xf32>
      %cst_15 = arith.constant dense<0.000000e+00> : vector<8x128xf32>
      %36 = vector.multi_reduction <add>, %35, %cst_15 [0] : vector<2x8x128xf32> to vector<8x128xf32>
      %37 = arith.addf %34, %36 : vector<8x128xf32>
      %c0_16 = arith.constant 0 : index
      %c0_17 = arith.constant 0 : index
      %c0_18 = arith.constant 0 : index
      %c0_19 = arith.constant 0 : index
      %38 = vector.load %arg4[%c0_16, %c0_17, %c0_18, %c0_19] : memref<1x4x8x128xf32, #tpu.memory_space<vmem>>, vector<1x1x8x128xf32>
      %39 = vector.shape_cast %38 : vector<1x1x8x128xf32> to vector<8x128xf32>
      %40 = vector.shape_cast %37 : vector<8x128xf32> to vector<1x1x8x128xf32>
      tpu.vector_store %arg4[%c0_16, %c0_17, %c0_18, %c0_19], %40 {strides = array<i32>} : memref<1x4x8x128xf32, #tpu.memory_space<vmem>>, vector<1x1x8x128xf32>,
      %c0_20 = arith.constant 0 : index
      %c1 = arith.constant 1 : index
      %c0_21 = arith.constant 0 : index
      %c0_22 = arith.constant 0 : index
      %41 = vector.load %arg4[%c0_20, %c1, %c0_21, %c0_22] : memref<1x4x8x128xf32, #tpu.memory_space<vmem>>, vector<1x1x8x128xf32>
      %42 = vector.shape_cast %41 : vector<1x1x8x128xf32> to vector<8x128xf32>
      %43 = vector.shape_cast %22 : vector<16x128xf32> to vector<2x8x128xf32>
      %cst_23 = arith.constant dense<0.000000e+00> : vector<8x128xf32>
      %44 = vector.multi_reduction <add>, %43, %cst_23 [0] : vector<2x8x128xf32> to vector<8x128xf32>
      %45 = arith.addf %42, %44 : vector<8x128xf32>
      %c0_24 = arith.constant 0 : index
      %c1_25 = arith.constant 1 : index
      %c0_26 = arith.constant 0 : index
      %c0_27 = arith.constant 0 : index
      %46 = vector.load %arg4[%c0_24, %c1_25, %c0_26, %c0_27] : memref<1x4x8x128xf32, #tpu.memory_space<vmem>>, vector<1x1x8x128xf32>
      %47 = vector.shape_cast %46 : vector<1x1x8x128xf32> to vector<8x128xf32>
      %48 = vector.shape_cast %45 : vector<8x128xf32> to vector<1x1x8x128xf32>
      tpu.vector_store %arg4[%c0_24, %c1_25, %c0_26, %c0_27], %48 {strides = array<i32>} : memref<1x4x8x128xf32, #tpu.memory_space<vmem>>, vector<1x1x8x128xf32>,
      %c0_28 = arith.constant 0 : index
      %c2 = arith.constant 2 : index
      %c0_29 = arith.constant 0 : index
      %c0_30 = arith.constant 0 : index
      %49 = vector.load %arg4[%c0_28, %c2, %c0_29, %c0_30] : memref<1x4x8x128xf32, #tpu.memory_space<vmem>>, vector<1x1x8x128xf32>
      %50 = vector.shape_cast %49 : vector<1x1x8x128xf32> to vector<8x128xf32>
      %51 = vector.shape_cast %21 : vector<16x128xf32> to vector<2x8x128xf32>
      %cst_31 = arith.constant dense<0.000000e+00> : vector<8x128xf32>
      %52 = vector.multi_reduction <add>, %51, %cst_31 [0] : vector<2x8x128xf32> to vector<8x128xf32>
      %53 = arith.addf %50, %52 : vector<8x128xf32>
      %c0_32 = arith.constant 0 : index
      %c2_33 = arith.constant 2 : index
      %c0_34 = arith.constant 0 : index
      %c0_35 = arith.constant 0 : index
      %54 = vector.load %arg4[%c0_32, %c2_33, %c0_34, %c0_35] : memref<1x4x8x128xf32, #tpu.memory_space<vmem>>, vector<1x1x8x128xf32>
      %55 = vector.shape_cast %54 : vector<1x1x8x128xf32> to vector<8x128xf32>
      %56 = vector.shape_cast %53 : vector<8x128xf32> to vector<1x1x8x128xf32>
      tpu.vector_store %arg4[%c0_32, %c2_33, %c0_34, %c0_35], %56 {strides = array<i32>} : memref<1x4x8x128xf32, #tpu.memory_space<vmem>>, vector<1x1x8x128xf32>,
      %c0_36 = arith.constant 0 : index
      %c3 = arith.constant 3 : index
      %c0_37 = arith.constant 0 : index
      %c0_38 = arith.constant 0 : index
      %57 = vector.load %arg4[%c0_36, %c3, %c0_37, %c0_38] : memref<1x4x8x128xf32, #tpu.memory_space<vmem>>, vector<1x1x8x128xf32>
      %58 = vector.shape_cast %57 : vector<1x1x8x128xf32> to vector<8x128xf32>
      %59 = vector.shape_cast %4 : vector<16x128xf32> to vector<2x8x128xf32>
      %cst_39 = arith.constant dense<0.000000e+00> : vector<8x128xf32>
      %60 = vector.multi_reduction <add>, %59, %cst_39 [0] : vector<2x8x128xf32> to vector<8x128xf32>
      %61 = arith.addf %58, %60 : vector<8x128xf32>
      %c0_40 = arith.constant 0 : index
      %c3_41 = arith.constant 3 : index
      %c0_42 = arith.constant 0 : index
      %c0_43 = arith.constant 0 : index
      %62 = vector.load %arg4[%c0_40, %c3_41, %c0_42, %c0_43] : memref<1x4x8x128xf32, #tpu.memory_space<vmem>>, vector<1x1x8x128xf32>
      %63 = vector.shape_cast %62 : vector<1x1x8x128xf32> to vector<8x128xf32>
      %64 = vector.shape_cast %61 : vector<8x128xf32> to vector<1x1x8x128xf32>
      tpu.vector_store %arg4[%c0_40, %c3_41, %c0_42, %c0_43], %64 {strides = array<i32>} : memref<1x4x8x128xf32, #tpu.memory_space<vmem>>, vector<1x1x8x128xf32>,
    } else {
    }
    %true = arith.constant true
    %30 = arith.xori %27, %true : i1
    %31 = arith.extui %30 : i1 to i32
    %c0_i32_10 = arith.constant 0 : i32
    %32 = arith.cmpi ne, %31, %c0_i32_10 : i32
    scf.if %32 {
      %33 = tpu.iota {dimensions = array<i32: 0>} : vector<16x128xi32>
      %34 = vector.broadcast %25 : i32 to vector<16x128xi32>
      %35 = arith.addi %34, %33 : vector<16x128xi32>
      %c16_i32_11 = arith.constant 16 : i32
      %36 = vector.broadcast %c16_i32_11 : i32 to vector<16x128xi32>
      %37 = arith.cmpi slt, %35, %36 : vector<16x128xi32>
      %cst_12 = arith.constant 0.000000e+00 : f32
      %38 = vector.broadcast %cst_12 : f32 to vector<16x128xf32>
      %39 = arith.select %37, %17, %38 : vector<16x128xi1>, vector<16x128xf32>
      %40 = arith.select %37, %22, %38 : vector<16x128xi1>, vector<16x128xf32>
      %41 = arith.select %37, %21, %38 : vector<16x128xi1>, vector<16x128xf32>
      %42 = arith.select %37, %4, %38 : vector<16x128xi1>, vector<16x128xf32>
      %c0_13 = arith.constant 0 : index
      %c0_14 = arith.constant 0 : index
      %c0_15 = arith.constant 0 : index
      %c0_16 = arith.constant 0 : index
      %43 = vector.load %arg4[%c0_13, %c0_14, %c0_15, %c0_16] : memref<1x4x8x128xf32, #tpu.memory_space<vmem>>, vector<1x1x8x128xf32>
      %44 = vector.shape_cast %43 : vector<1x1x8x128xf32> to vector<8x128xf32>
      %45 = vector.shape_cast %39 : vector<16x128xf32> to vector<2x8x128xf32>
      %cst_17 = arith.constant dense<0.000000e+00> : vector<8x128xf32>
      %46 = vector.multi_reduction <add>, %45, %cst_17 [0] : vector<2x8x128xf32> to vector<8x128xf32>
      %47 = arith.addf %44, %46 : vector<8x128xf32>
      %c0_18 = arith.constant 0 : index
      %c0_19 = arith.constant 0 : index
      %c0_20 = arith.constant 0 : index
      %c0_21 = arith.constant 0 : index
      %48 = vector.load %arg4[%c0_18, %c0_19, %c0_20, %c0_21] : memref<1x4x8x128xf32, #tpu.memory_space<vmem>>, vector<1x1x8x128xf32>
      %49 = vector.shape_cast %48 : vector<1x1x8x128xf32> to vector<8x128xf32>
      %50 = vector.shape_cast %47 : vector<8x128xf32> to vector<1x1x8x128xf32>
      tpu.vector_store %arg4[%c0_18, %c0_19, %c0_20, %c0_21], %50 {strides = array<i32>} : memref<1x4x8x128xf32, #tpu.memory_space<vmem>>, vector<1x1x8x128xf32>,
      %c0_22 = arith.constant 0 : index
      %c1 = arith.constant 1 : index
      %c0_23 = arith.constant 0 : index
      %c0_24 = arith.constant 0 : index
      %51 = vector.load %arg4[%c0_22, %c1, %c0_23, %c0_24] : memref<1x4x8x128xf32, #tpu.memory_space<vmem>>, vector<1x1x8x128xf32>
      %52 = vector.shape_cast %51 : vector<1x1x8x128xf32> to vector<8x128xf32>
      %53 = vector.shape_cast %40 : vector<16x128xf32> to vector<2x8x128xf32>
      %cst_25 = arith.constant dense<0.000000e+00> : vector<8x128xf32>
      %54 = vector.multi_reduction <add>, %53, %cst_25 [0] : vector<2x8x128xf32> to vector<8x128xf32>
      %55 = arith.addf %52, %54 : vector<8x128xf32>
      %c0_26 = arith.constant 0 : index
      %c1_27 = arith.constant 1 : index
      %c0_28 = arith.constant 0 : index
      %c0_29 = arith.constant 0 : index
      %56 = vector.load %arg4[%c0_26, %c1_27, %c0_28, %c0_29] : memref<1x4x8x128xf32, #tpu.memory_space<vmem>>, vector<1x1x8x128xf32>
      %57 = vector.shape_cast %56 : vector<1x1x8x128xf32> to vector<8x128xf32>
      %58 = vector.shape_cast %55 : vector<8x128xf32> to vector<1x1x8x128xf32>
      tpu.vector_store %arg4[%c0_26, %c1_27, %c0_28, %c0_29], %58 {strides = array<i32>} : memref<1x4x8x128xf32, #tpu.memory_space<vmem>>, vector<1x1x8x128xf32>,
      %c0_30 = arith.constant 0 : index
      %c2 = arith.constant 2 : index
      %c0_31 = arith.constant 0 : index
      %c0_32 = arith.constant 0 : index
      %59 = vector.load %arg4[%c0_30, %c2, %c0_31, %c0_32] : memref<1x4x8x128xf32, #tpu.memory_space<vmem>>, vector<1x1x8x128xf32>
      %60 = vector.shape_cast %59 : vector<1x1x8x128xf32> to vector<8x128xf32>
      %61 = vector.shape_cast %41 : vector<16x128xf32> to vector<2x8x128xf32>
      %cst_33 = arith.constant dense<0.000000e+00> : vector<8x128xf32>
      %62 = vector.multi_reduction <add>, %61, %cst_33 [0] : vector<2x8x128xf32> to vector<8x128xf32>
      %63 = arith.addf %60, %62 : vector<8x128xf32>
      %c0_34 = arith.constant 0 : index
      %c2_35 = arith.constant 2 : index
      %c0_36 = arith.constant 0 : index
      %c0_37 = arith.constant 0 : index
      %64 = vector.load %arg4[%c0_34, %c2_35, %c0_36, %c0_37] : memref<1x4x8x128xf32, #tpu.memory_space<vmem>>, vector<1x1x8x128xf32>
      %65 = vector.shape_cast %64 : vector<1x1x8x128xf32> to vector<8x128xf32>
      %66 = vector.shape_cast %63 : vector<8x128xf32> to vector<1x1x8x128xf32>
      tpu.vector_store %arg4[%c0_34, %c2_35, %c0_36, %c0_37], %66 {strides = array<i32>} : memref<1x4x8x128xf32, #tpu.memory_space<vmem>>, vector<1x1x8x128xf32>,
      %c0_38 = arith.constant 0 : index
      %c3 = arith.constant 3 : index
      %c0_39 = arith.constant 0 : index
      %c0_40 = arith.constant 0 : index
      %67 = vector.load %arg4[%c0_38, %c3, %c0_39, %c0_40] : memref<1x4x8x128xf32, #tpu.memory_space<vmem>>, vector<1x1x8x128xf32>
      %68 = vector.shape_cast %67 : vector<1x1x8x128xf32> to vector<8x128xf32>
      %69 = vector.shape_cast %42 : vector<16x128xf32> to vector<2x8x128xf32>
      %cst_41 = arith.constant dense<0.000000e+00> : vector<8x128xf32>
      %70 = vector.multi_reduction <add>, %69, %cst_41 [0] : vector<2x8x128xf32> to vector<8x128xf32>
      %71 = arith.addf %68, %70 : vector<8x128xf32>
      %c0_42 = arith.constant 0 : index
      %c3_43 = arith.constant 3 : index
      %c0_44 = arith.constant 0 : index
      %c0_45 = arith.constant 0 : index
      %72 = vector.load %arg4[%c0_42, %c3_43, %c0_44, %c0_45] : memref<1x4x8x128xf32, #tpu.memory_space<vmem>>, vector<1x1x8x128xf32>
      %73 = vector.shape_cast %72 : vector<1x1x8x128xf32> to vector<8x128xf32>
      %74 = vector.shape_cast %71 : vector<8x128xf32> to vector<1x1x8x128xf32>
      tpu.vector_store %arg4[%c0_42, %c3_43, %c0_44, %c0_45], %74 {strides = array<i32>} : memref<1x4x8x128xf32, #tpu.memory_space<vmem>>, vector<1x1x8x128xf32>,
    } else {
    }
    return
  }
  func.func @transform_0(%arg0: i32, %arg1: i32) -> (i32, i32) {
    %c1_i32 = arith.constant 1 : i32
    %0 = arith.muli %arg0, %c1_i32 : i32
    %1 = arith.addi %0, %arg1 : i32
    %c0_i32 = arith.constant 0 : i32
    %2 = arith.minsi %1, %c0_i32 : i32
    %c0_i32_0 = arith.constant 0 : i32
    %c0_i32_1 = arith.constant 0 : i32
    return %2, %c0_i32_0 : i32, i32
  }
  func.func @transform_1(%arg0: i32, %arg1: i32) -> (i32, i32) {
    %c1_i32 = arith.constant 1 : i32
    %0 = arith.muli %arg0, %c1_i32 : i32
    %1 = arith.addi %0, %arg1 : i32
    %c0_i32 = arith.constant 0 : i32
    %2 = arith.minsi %1, %c0_i32 : i32
    %c0_i32_0 = arith.constant 0 : i32
    %c0_i32_1 = arith.constant 0 : i32
    return %2, %c0_i32_0 : i32, i32
  }
  func.func @transform_2(%arg0: i32, %arg1: i32) -> (i32, i32, i32, i32) {
    %c0_i32 = arith.constant 0 : i32
    %c0_i32_0 = arith.constant 0 : i32
    %c0_i32_1 = arith.constant 0 : i32
    %c0_i32_2 = arith.constant 0 : i32
    return %arg0, %c0_i32, %c0_i32_0, %c0_i32_1 : i32, i32, i32, i32
  }
}

</mosaic_0001>

<llo_original>
// kernel: tpu_custom_call.1
$region0: #{tpu_custom_call.1}
  #allocation0 [shape = 'u32[]', space=smem, size = 0x4, offset = 0x4, fixed_abs, tag = 'smem constant byte address 0x4 - core index']
  #allocation1 [shape = 'u32[72,128]{1,0:T(1,128)}', space=vmem, size = 0x9000, scoped, tag = 'internal scratch']
  %s0 = inlined_call_operand.hbm [shape: f32[16,128], index: 0, kind: input, shape index: {}]
  %s1 = inlined_call_operand.hbm [shape: f32[16,128], index: 1, kind: input, shape index: {}]
  %s2 = inlined_call_operand.hbm [shape: f32[1,4,8,128], index: 2, kind: output, shape index: {}]
  %s3 = sld [smem:[#allocation0]]
  $region38: #{tpu_custom_call.1} parent=0
    _
  %s5 = ssub.s32 1, %s3
  %s6 = scalar_select 0, %s5, %s3
  $region1: #{tpu_custom_call.1} parent=0
    #allocation2 [shape = 'u8[8192]{0}', space=vmem, size = 0x2000, scoped, tag = 'input window, operand 0, single buffered']
    #allocation3 [shape = 's32[1]{0}', space=sflag, size = 0x4, scoped, tag = 'scoped memory for tpu_custom_call.1']
    #allocation4 [shape = 's32[1]{0}', space=sflag, size = 0x4, scoped, tag = 'scoped memory for tpu_custom_call.1']
    #allocation5 [shape = 'u8[8192]{0}', space=vmem, size = 0x2000, scoped, tag = 'input window, operand 1, single buffered']
    #allocation6 [shape = 's32[1]{0}', space=sflag, size = 0x4, scoped, tag = 'scoped memory for tpu_custom_call.1']
    #allocation7 [shape = 'u8[16384]{0}', space=vmem, size = 0x4000, scoped, tag = 'output window, operand 0, single buffered']
    %7 = vsyncpa [#allocation3], 0
    %8 = vsyncpa [#allocation6], 0
    %9 = vsyncpa [#allocation4], 0
    // Predicated region
    $region2: #{tpu_custom_call.1} parent=1 // pred_check
      _
    $region3: #{tpu_custom_call.1} parent=1 // pred_check_branch
      %11 = sbr.rel (0) target = $region5
    $region4: #{tpu_custom_call.1} parent=1 // pred_region
      %s12 = sadd.s32 0, 0
      %p13 = scmp.lt.s32.totalorder %s12, 0
      %s14 = scalar_select %p13, %s12, 0
      %s15 = smul.u32 2, %s14
      %17 = vsyncadd [#allocation3], 0
      %s18 = smul.addr %s15, 8
      %s19 = scalar_lea.hbm %s0, %s18
      %s20 = sshll.u32 %s19, 4
      %s21 = int_to_ptr.hbm [resolvable:$true] %s20
      %s22 = sshll.u32 [#allocation2], 4
      %s23 = int_to_ptr.vmem [resolvable:$true] %s22
      %28 = dma.hbm_to_vmem [thread:$0]  %s21, 256, %s23, [#allocation3], 128, 128, 8
    $region5: #{tpu_custom_call.1} parent=1 // pred_fallthru
      _
    // Predicated region
    $region6: #{tpu_custom_call.1} parent=1 // pred_check
      _
    $region7: #{tpu_custom_call.1} parent=1 // pred_check_branch
      %30 = sbr.rel (0) target = $region9
    $region8: #{tpu_custom_call.1} parent=1 // pred_region
      %s31 = sadd.s32 0, 0
      %p32 = scmp.lt.s32.totalorder %s31, 0
      %s33 = scalar_select %p32, %s31, 0
      %s34 = smul.u32 2, %s33
      %36 = vsyncadd [#allocation6], 0
      %s37 = smul.addr %s34, 8
      %s38 = scalar_lea.hbm %s1, %s37
      %s39 = sshll.u32 %s38, 4
      %s40 = int_to_ptr.hbm [resolvable:$true] %s39
      %s41 = sshll.u32 [#allocation5], 4
      %s42 = int_to_ptr.vmem [resolvable:$true] %s41
      %47 = dma.hbm_to_vmem [thread:$0]  %s40, 256, %s42, [#allocation6], 128, 128, 8
    $region9: #{tpu_custom_call.1} parent=1 // pred_fallthru
      _
    // Predicated region
    $region10: #{tpu_custom_call.1} parent=1 // pred_check
      _
    $region11: #{tpu_custom_call.1} parent=1 // pred_check_branch
      %49 = sbr.rel (0) target = $region13
    $region12: #{tpu_custom_call.1} parent=1 // pred_region
      %51 = dma.done [#allocation3], 256
    $region13: #{tpu_custom_call.1} parent=1 // pred_fallthru
      _
    // Predicated region
    $region14: #{tpu_custom_call.1} parent=1 // pred_check
      _
    $region15: #{tpu_custom_call.1} parent=1 // pred_check_branch
      %53 = sbr.rel (0) target = $region17
    $region16: #{tpu_custom_call.1} parent=1 // pred_region
      %55 = dma.done [#allocation6], 256
    $region17: #{tpu_custom_call.1} parent=1 // pred_fallthru
      _
    %s56 = sadd.s32 0, 0
    %p57 = scmp.lt.s32.totalorder %s56, 0
    %s58 = scalar_select %p57, %s56, 0
    %s59 = smul.u32 2, %s58
    %s60 = sadd.s32 0, 0
    %p61 = scmp.lt.s32.totalorder %s60, 0
    %s62 = scalar_select %p61, %s60, 0
    %s63 = smul.u32 2, %s62
    %p64 = scmp.eq.s32.totalorder 0, 0
    // Predicated region
    $region18: #{tpu_custom_call.1} parent=1 // pred_check
      %p65 = pneg %p64
    $region19: #{tpu_custom_call.1} parent=1 // pred_check_branch
      %67 = sbr.rel (%p65) target = $region21
    $region20: #{tpu_custom_call.1} parent=1 // pred_region
      %68 = vst [vmem:[#allocation7] sm:$0xff] 0.0
      %69 = vst [vmem:[#allocation7 + $0x8] sm:$0xff] 0.0
      %70 = vst [vmem:[#allocation7 + $0x10] sm:$0xff] 0.0
      %71 = vst [vmem:[#allocation7 + $0x18] sm:$0xff] 0.0
    $region21: #{tpu_custom_call.1} parent=1 // pred_fallthru
      _
    %v72 = vld [vmem:[#allocation2] sm:$0xff]
    %v73 = vld [vmem:[#allocation2 + $0x8] sm:$0xff]
    %v74 = vld [vmem:[#allocation5] sm:$0xff]
    %v75 = vld [vmem:[#allocation5 + $0x8] sm:$0xff]
    %v76 = vand.u32 2147483647, %v72
    %v77 = vand.u32 2147483647, %v73
    %v78 = vsub.f32 0.0, %v76
    %v79 = vsub.f32 0.0, %v77
    %v80 = vmul.f32 %v78, 1.442695
    %v81 = vpow.pop %v80
    %v82 = vmul.f32 %v79, 1.442695
    %v83 = vpow.pop %v82
    %v84 = vadd.f32 %v81, 1.0
    %v85 = vadd.f32 %v83, 1.0
    %v86 = vrcp.pop %v84
    %v87 = vmul.f32 %v84, %v86
    %v88 = vsub.f32 1.0, %v87
    %v89 = vmul.f32 %v86, %v88
    %v90 = vadd.f32 %v86, %v89
    %vm91 = vweird.f32 %v84
    %vm92 = vweird.f32 %v86
    %vm93 = vmor %vm91, %vm92
    %v94 = vsel %vm93, %v86, %v90
    %v95 = vand.u32 2147483647, %v84
    %vm96 = vcmp.eq.f32.partialorder %v95, 8.507059e+37
    %v97 = vand.u32 %v84, 2147483648
    %v98 = vor.u32 1.1754944e-38, %v97
    %v99 = vsel %vm96, %v98, %v94
    %v100 = vrcp.pop %v85
    %v101 = vmul.f32 %v85, %v100
    %v102 = vsub.f32 1.0, %v101
    %v103 = vmul.f32 %v100, %v102
    %v104 = vadd.f32 %v100, %v103
    %vm105 = vweird.f32 %v85
    %vm106 = vweird.f32 %v100
    %vm107 = vmor %vm105, %vm106
    %v108 = vsel %vm107, %v100, %v104
    %v109 = vand.u32 2147483647, %v85
    %vm110 = vcmp.eq.f32.partialorder %v109, 8.507059e+37
    %v111 = vand.u32 %v85, 2147483648
    %v112 = vor.u32 1.1754944e-38, %v111
    %v113 = vsel %vm110, %v112, %v108
    %v114 = vmax.f32 %v72, 0.0
    %v115 = vmax.f32 %v73, 0.0
    %v116 = vmul.f32 %v72, %v74
    %v117 = vmul.f32 %v73, %v75
    %v118 = vsub.f32 %v114, %v116
    %v119 = vsub.f32 %v115, %v117
    %v120 = vlog2.pop %v84
    %v121 = vmul.f32 %v120, 0.6931472
    %v122 = vlog2.pop %v85
    %v123 = vmul.f32 %v122, 0.6931472
    %v124 = vadd.f32 %v118, %v121
    %v125 = vadd.f32 %v119, %v123
    %vm126 = vcmp.ge.f32.partialorder %v72, 0.0
    %vm127 = vcmp.ge.f32.partialorder %v73, 0.0
    %v128 = vmul.f32 %v81, %v99
    %v129 = vmul.f32 %v83, %v113
    %v130 = vsel %vm126, %v99, %v128
    %v131 = vsel %vm127, %v113, %v129
    %v132 = vmul.f32 %v130, %v74
    %v133 = vmul.f32 %v131, %v75
    %s134 = sadd.s32 0, 0
    %s135 = smul.u32 %s134, 16
    %s136 = sadd.s32 %s135, 16
    %p137 = scmp.le.s32.totalorder %s136, 16
    // Predicated region
    $region22: #{tpu_custom_call.1} parent=1 // pred_check
      %p138 = pneg %p137
    $region23: #{tpu_custom_call.1} parent=1 // pred_check_branch
      %140 = sbr.rel (%p138) target = $region25
    $region24: #{tpu_custom_call.1} parent=1 // pred_region
      %v141 = vld [vmem:[#allocation7] sm:$0xff]
      %v142 = vadd.f32 %v124, %v125
      %v143 = vadd.f32 %v141, %v142
      %144 = vst [vmem:[#allocation7] sm:$0xff] %v143
      %s145 = scalar_lea.vmem [#allocation7], 8
      %v146 = vld [vmem:[%s145] sm:$0xff]
      %v147 = vadd.f32 %v132, %v133
      %v148 = vadd.f32 %v146, %v147
      %149 = vst [vmem:[%s145] sm:$0xff] %v148
      %s150 = scalar_lea.vmem [#allocation7], 16
      %v151 = vld [vmem:[%s150] sm:$0xff]
      %v152 = vadd.f32 %v130, %v131
      %v153 = vadd.f32 %v151, %v152
      %154 = vst [vmem:[%s150] sm:$0xff] %v153
      %s155 = scalar_lea.vmem [#allocation7], 24
      %v156 = vld [vmem:[%s155] sm:$0xff]
      %v157 = vadd.f32 %v74, %v75
      %v158 = vadd.f32 %v156, %v157
      %159 = vst [vmem:[%s155] sm:$0xff] %v158
    $region25: #{tpu_custom_call.1} parent=1 // pred_fallthru
      _
    %p160 = scmp.gt.s32.totalorder %s136, 16
    // Predicated region
    $region26: #{tpu_custom_call.1} parent=1 // pred_check
      %p161 = pneg %p160
    $region27: #{tpu_custom_call.1} parent=1 // pred_check_branch
      %163 = sbr.rel (%p161) target = $region29
    $region28: #{tpu_custom_call.1} parent=1 // pred_region
      %v164 = vlaneseq
      %v165 = vshrl.u32 %v164, 7
      %v166 = vadd.s32 %v165, 8
      %v167 = vstv %s135
      %v168 = vadd.s32 %v167, %v165
      %v169 = vadd.s32 %v167, %v166
      %vm170 = vcmp.lt.s32.totalorder %v168, 16
      %vm171 = vcmp.lt.s32.totalorder %v169, 16
      %v172 = vsel %vm170, %v124, 0.0
      %v173 = vsel %vm171, %v125, 0.0
      %v174 = vsel %vm170, %v132, 0.0
      %v175 = vsel %vm171, %v133, 0.0
      %v176 = vsel %vm170, %v130, 0.0
      %v177 = vsel %vm171, %v131, 0.0
      %v178 = vsel %vm170, %v74, 0.0
      %v179 = vsel %vm171, %v75, 0.0
      %v180 = vld [vmem:[#allocation7] sm:$0xff]
      %v181 = vadd.f32 %v172, %v173
      %v182 = vadd.f32 %v180, %v181
      %183 = vst [vmem:[#allocation7] sm:$0xff] %v182
      %s184 = scalar_lea.vmem [#allocation7], 8
      %v185 = vld [vmem:[%s184] sm:$0xff]
      %v186 = vadd.f32 %v174, %v175
      %v187 = vadd.f32 %v185, %v186
      %188 = vst [vmem:[%s184] sm:$0xff] %v187
      %s189 = scalar_lea.vmem [#allocation7], 16
      %v190 = vld [vmem:[%s189] sm:$0xff]
      %v191 = vadd.f32 %v176, %v177
      %v192 = vadd.f32 %v190, %v191
      %193 = vst [vmem:[%s189] sm:$0xff] %v192
      %s194 = scalar_lea.vmem [#allocation7], 24
      %v195 = vld [vmem:[%s194] sm:$0xff]
      %v196 = vadd.f32 %v178, %v179
      %v197 = vadd.f32 %v195, %v196
      %198 = vst [vmem:[%s194] sm:$0xff] %v197
    $region29: #{tpu_custom_call.1} parent=1 // pred_fallthru
      _
    // Predicated region
    $region30: #{tpu_custom_call.1} parent=1 // pred_check
      _
    $region31: #{tpu_custom_call.1} parent=1 // pred_check_branch
      %200 = sbr.rel (0) target = $region33
    $region32: #{tpu_custom_call.1} parent=1 // pred_region
      %202 = vsyncadd [#allocation4], 0
      %s203 = sshll.u32 [#allocation7], 4
      %s204 = int_to_ptr.vmem [resolvable:$true] %s203
      %s205 = sshll.u32 %s2, 4
      %s206 = int_to_ptr.hbm [resolvable:$true] %s205
      %211 = dma.vmem_to_hbm [thread:$0]  %s204, 512, %s206, [#allocation4], 128, 128, 8
    $region33: #{tpu_custom_call.1} parent=1 // pred_fallthru
      _
    // Predicated region
    $region34: #{tpu_custom_call.1} parent=1 // pred_check
      _
    $region35: #{tpu_custom_call.1} parent=1 // pred_check_branch
      %213 = sbr.rel (0) target = $region37
    $region36: #{tpu_custom_call.1} parent=1 // pred_region
      %215 = dma.done [#allocation4], 512
    $region37: #{tpu_custom_call.1} parent=1 // pred_fallthru
      _
    %216 = vsyncpa [#allocation3], 1
    %217 = vsyncpa [#allocation6], 1
    %218 = vsyncpa [#allocation4], 1

</llo_original>
